<compile_context>
chip_gen: v5e
topology: v5e:2x2
jax: 0.10.0
libtpu: 0.0.40
codegen_flags: <defaults>
</compile_context>

<pallas_src>
import functools

import jax
import jax.numpy as jnp
from jax.experimental import pallas as pl
from jax.experimental.pallas import tpu as pltpu


def _round_up(x, m):
    return ((x + m - 1) // m) * m


def ignore_linear_kernel(x_ref, w_ref, b_ref, o_ref, *, compute_dtype):
    # out = x @ W + b.  `t` is ignored by the module, so it never enters the kernel.
    x = x_ref[...].astype(compute_dtype)
    w = w_ref[...].astype(compute_dtype)
    y = jnp.dot(x, w, preferred_element_type=jnp.float32)
    o_ref[...] = (y + b_ref[...].astype(jnp.float32)).astype(o_ref.dtype)


def _vmem_needed(block_n, dim_in, dim_out, x_bytes, w_bytes, b_bytes, out_bytes):
    # Conservative: assume the pipeline double-buffers EVERY input, including
    # the constant-index_map W / bias blocks.
    return (2 * block_n * dim_in * x_bytes
            + 2 * block_n * dim_out * out_bytes
            + 2 * dim_in * dim_out * w_bytes
            + 2 * 8 * _round_up(dim_out, 128) * b_bytes)


def ignore_linear(t, x, w, b, *, block_n=512, compute_dtype=None, out_dtype=None,
                  min_grid_steps=2):
    """IgnoreLinear.forward(t, x): t ignored; out = x @ w + b.

    t: scalar (ignored), x: (N, dim_in), w: (dim_in, dim_out) == _layer.weight.T,
    b: (dim_out,) or (1, dim_out) == _layer.bias.
    compute_dtype: dtype used for the MXU operands (defaults to x.dtype for
      torch-parity numerics; pass jnp.bfloat16 to narrow inside the kernel).
    out_dtype: output dtype (defaults to x.dtype; pass bf16 to halve output
      HBM traffic when downstream tolerates it).
    """
    del t  # the module ignores the time input
    N, dim_in = x.shape
    dim_out = w.shape[1]
    compute_dtype = x.dtype if compute_dtype is None else compute_dtype
    out_dtype = x.dtype if out_dtype is None else out_dtype

    b2 = jnp.reshape(b, (1, dim_out))

    x_bytes = jnp.dtype(x.dtype).itemsize
    w_bytes = jnp.dtype(w.dtype).itemsize
    b_bytes = jnp.dtype(b2.dtype).itemsize
    out_bytes = jnp.dtype(out_dtype).itemsize

    # --- Row-tile selection ---------------------------------------------------
    # (a) multiple of 8 (sublane), (b) at least `min_grid_steps` grid steps so
    # the "parallel" axis shards across v7x's two TensorCores, (c) fits a VMEM
    # budget safe on every generation (v7x: 64 MiB physical per TC).
    block_n = max(8, min(block_n, _round_up(pl.cdiv(N, min_grid_steps), 8)))
    block_n = _round_up(block_n, 8)
    vmem_budget = 48 << 20
    while block_n > 8 and _vmem_needed(block_n, dim_in, dim_out,
                                       x_bytes, w_bytes, b_bytes, out_bytes) > vmem_budget:
        block_n = max(8, _round_up(block_n // 2, 8))

    grid = (pl.cdiv(N, block_n),)  # ragged last block is masked by Pallas

    vmem_needed = _vmem_needed(block_n, dim_in, dim_out,
                               x_bytes, w_bytes, b_bytes, out_bytes)
    vmem_limit = min(vmem_needed + (4 << 20), 56 << 20)  # explicit, with headroom

    cost = pl.CostEstimate(
        flops=2 * N * dim_in * dim_out,
        transcendentals=0,
        bytes_accessed=(N * dim_in * x_bytes + dim_in * dim_out * w_bytes
                        + dim_out * b_bytes + N * dim_out * out_bytes))

    kernel = functools.partial(ignore_linear_kernel, compute_dtype=compute_dtype)

    out = pl.pallas_call(
        kernel,
        out_shape=jax.ShapeDtypeStruct((N, dim_out), out_dtype),
        grid=grid,
        in_specs=[
            pl.BlockSpec((block_n, dim_in), lambda i: (i, 0)),   # x row tile
            pl.BlockSpec((dim_in, dim_out), lambda i: (0, 0)),   # W (full, VMEM-resident)
            pl.BlockSpec((1, dim_out), lambda i: (0, 0)),        # bias (VMEM-resident)
        ],
        out_specs=pl.BlockSpec((block_n, dim_out), lambda i: (i, 0)),
        compiler_params=pltpu.CompilerParams(
            dimension_semantics=("parallel",),   # shards N across v7x's 2 TCs
            vmem_limit_bytes=vmem_limit),
        cost_estimate=cost,
    )(x, w, b2)

    return out


if __name__ == "__main__":
    key = jax.random.PRNGKey(0)
    k_x, k_w, k_b, k_t = jax.random.split(key, 4)

    # Small but intentionally "awkward" shapes: N is not a multiple of the row
    # tile and dim_out is not a multiple of 128, exercising the masked ragged
    # last block and the full-dim (non-128-multiple) output block.
    N, dim_in, dim_out = 200, 32, 192

    x = jax.random.normal(k_x, (N, dim_in), dtype=jnp.float32)
    w = jax.random.normal(k_w, (dim_in, dim_out), dtype=jnp.float32) * 0.1   # _layer.weight.T
    b = jax.random.normal(k_b, (dim_out,), dtype=jnp.float32) * 0.1          # _layer.bias
    t = jax.random.normal(k_t, (), dtype=jnp.float32)                        # ignored by the module

    out = ignore_linear(t, x, w, b)
    out = jax.block_until_ready(out)

    # Reference 1: same default-precision f32 dot as the kernel uses.
    ref_same = jnp.dot(x, w, preferred_element_type=jnp.float32) + b[None, :]
    # Reference 2: high-precision f32 matmul (closest to torch f32 nn.Linear).
    ref_hi = jnp.dot(x, w, precision=jax.lax.Precision.HIGHEST) + b[None, :]

    assert out.shape == (N, dim_out)
    assert out.dtype == x.dtype
    assert jnp.allclose(out, ref_same, atol=1e-3, rtol=1e-3), "mismatch vs matched-precision reference"
    assert jnp.allclose(out, ref_hi, atol=2e-2, rtol=2e-2), "mismatch vs high-precision f32 reference"

    print("KERNEL_OK")
</pallas_src>

<mosaic_0001>
module attributes {stable_mosaic.version = 11 : i64} {
  func.func @ignore_linear_kernel(%arg0: i32, %arg1: memref<104x32xf32, #tpu.memory_space<vmem>>, %arg2: memref<32x192xf32, #tpu.memory_space<vmem>>, %arg3: memref<1x192xf32, #tpu.memory_space<vmem>>, %arg4: memref<104x192xf32, #tpu.memory_space<vmem>>) attributes {dimension_semantics = [#tpu.dimension_semantics<parallel>], iteration_bounds = array<i64: 2>, scalar_prefetch = 0 : i64, scratch_operands = 0 : i64, tpu.core_type = #tpu.core_type<tc>, window_params = [{transform_indices = @transform_0, window_bounds = array<i64: 104, 32>}, {pipeline_mode = #tpu.pipeline_mode<synchronous>, transform_indices = @transform_1, window_bounds = array<i64: 32, 192>}, {pipeline_mode = #tpu.pipeline_mode<synchronous>, transform_indices = @transform_2, window_bounds = array<i64: 1, 192>}, {transform_indices = @transform_3, window_bounds = array<i64: 104, 192>}]} {
    %c0 = arith.constant 0 : index
    %c0_0 = arith.constant 0 : index
    %0 = vector.load %arg1[%c0, %c0_0] : memref<104x32xf32, #tpu.memory_space<vmem>>, vector<104x32xf32>
    %c0_1 = arith.constant 0 : index
    %c0_2 = arith.constant 0 : index
    %1 = vector.load %arg2[%c0_1, %c0_2] : memref<32x192xf32, #tpu.memory_space<vmem>>, vector<32x192xf32>
    %cst = arith.constant dense<0.000000e+00> : vector<104x192xf32>
    %2 = tpu.matmul %0, %1, %cst {dimension_numbers = #tpu.dot_dimension_numbers<[1], [0], [0], [1], [0, 0, 1, 1], [], []>} : vector<104x32xf32>, vector<32x192xf32>, vector<104x192xf32> -> vector<104x192xf32>
    %c0_3 = arith.constant 0 : index
    %c0_4 = arith.constant 0 : index
    %3 = vector.load %arg3[%c0_3, %c0_4] : memref<1x192xf32, #tpu.memory_space<vmem>>, vector<1x192xf32>
    %4 = vector.broadcast %3 : vector<1x192xf32> to vector<104x192xf32>
    %5 = arith.addf %2, %4 : vector<104x192xf32>
    %c0_5 = arith.constant 0 : index
    %c0_6 = arith.constant 0 : index
    %6 = vector.load %arg4[%c0_5, %c0_6] : memref<104x192xf32, #tpu.memory_space<vmem>>, vector<104x192xf32>
    tpu.vector_store %arg4[%c0_5, %c0_6], %5 {strides = array<i32>} : memref<104x192xf32, #tpu.memory_space<vmem>>, vector<104x192xf32>,
    return
  }
  func.func @transform_0(%arg0: i32) -> (i32, i32) {
    %c0_i32 = arith.constant 0 : i32
    %c0_i32_0 = arith.constant 0 : i32
    return %arg0, %c0_i32 : i32, i32
  }
  func.func @transform_1(%arg0: i32) -> (i32, i32) {
    %c0_i32 = arith.constant 0 : i32
    %c0_i32_0 = arith.constant 0 : i32
    %c0_i32_1 = arith.constant 0 : i32
    return %c0_i32, %c0_i32_0 : i32, i32
  }
  func.func @transform_2(%arg0: i32) -> (i32, i32) {
    %c0_i32 = arith.constant 0 : i32
    %c0_i32_0 = arith.constant 0 : i32
    %c0_i32_1 = arith.constant 0 : i32
    return %c0_i32, %c0_i32_0 : i32, i32
  }
  func.func @transform_3(%arg0: i32) -> (i32, i32) {
    %c0_i32 = arith.constant 0 : i32
    %c0_i32_0 = arith.constant 0 : i32
    return %arg0, %c0_i32 : i32, i32
  }
}

</mosaic_0001>

<llo_original>
// kernel: tpu_custom_call.1
$region0: #{tpu_custom_call.1}
  #allocation0 [shape = 'u32[]', space=smem, size = 0x4, offset = 0x4, fixed_abs, tag = 'smem constant byte address 0x4 - core index']
  #allocation1 [shape = 'u32[72,128]{1,0:T(1,128)}', space=vmem, size = 0x9000, scoped, tag = 'internal scratch']
  %s0 = inlined_call_operand.vmem [shape: f32[200,32], index: 0, kind: input, shape index: {}]
  %s1 = inlined_call_operand.vmem [shape: f32[32,192], index: 1, kind: input, shape index: {}]
  %s2 = inlined_call_operand.vmem [shape: f32[1,192], index: 2, kind: input, shape index: {}]
  %s3 = inlined_call_operand.vmem [shape: f32[200,192], index: 3, kind: output, shape index: {}]
  %s4 = sld [smem:[#allocation0]]
  $region71: #{tpu_custom_call.1} parent=0
    _
  %s6 = ssub.s32 1, %s4
  %s7 = scalar_select 0, %s6, %s4
  $region1: #{tpu_custom_call.1} parent=0
    #allocation2 [shape = 'u8[212992]{0}', space=vmem, size = 0x34000, scoped, tag = 'output window, operand 0']
    loop: start=0, step=1, limit=4
    $region2: #{tpu_custom_call.1} parent=1 // loop_pre_header
      _
    $region3: #{tpu_custom_call.1} parent=1 // loop_header
      %s9 = sphi 0, %s13
      %p10 = scmp.ge.s32.totalorder %s9, 4
      %s19 = sphi 0, %s21
      %s22 = sphi 0, %s19
      %s23 = sphi 0, %s22
      %s39 = sphi 0, %s23
      %s43 = sphi 0, %s43
      %s45 = sphi 0, %s43
      %s46 = sphi 0, %s45
      %s60 = sphi 0, %s46
      %s64 = sphi 0, %s64
      %s66 = sphi 0, %s64
      %s67 = sphi 0, %s66
      %s81 = sphi 0, %s67
      %s87 = sphi 0, %s89
      %s90 = sphi 0, %s87
      %s91 = sphi 0, %s90
      %s107 = sphi 0, %s91
    $region4: #{tpu_custom_call.1} parent=1 // loop_header_branch
      %12 = sbr.rel (%p10) target = $region8
    $region5: #{tpu_custom_call.1} parent=1 // loop_body
      %s14 = ssub.s32 %s9, 1
      %s15 = ssub.s32 %s9, 2
      %s16 = sadd.s32 %s9, 1
      %s17 = ssub.s32 %s9, %s16
      %p18 = scmp.eq.s32.totalorder %s17, 0
      %s20 = sadd.s32 %s19, 1
      %s21 = scalar_select %p18, %s19, %s20
      %p24 = pneg %p18
      %p25 = scmp.eq.s32.totalorder %s9, 1
      %p26 = por %p24, %p25
      %p27 = scmp.ne.s32.totalorder %s19, %s22
      %p28 = scmp.eq.s32.totalorder %s9, 0
      %p29 = por %p27, %p28
      %p30 = scmp.ne.s32.totalorder %s19, %s22
      %p31 = scmp.eq.s32.totalorder %s14, 1
      %p32 = por %p30, %p31
      %p33 = scmp.ne.s32.totalorder %s22, %s23
      %p34 = scmp.eq.s32.totalorder %s14, 0
      %p35 = por %p33, %p34
      %p36 = scmp.ne.s32.totalorder %s22, %s23
      %p37 = scmp.eq.s32.totalorder %s15, 1
      %p38 = por %p36, %p37
      %p40 = scmp.ne.s32.totalorder %s23, %s39
      %p41 = scmp.eq.s32.totalorder %s15, 0
      %p42 = por %p40, %p41
      %s44 = sadd.s32 %s43, 1
      %p47 = scmp.eq.s32.totalorder %s9, 1
      %p48 = scmp.ne.s32.totalorder %s43, %s45
      %p49 = scmp.eq.s32.totalorder %s9, 0
      %p50 = por %p48, %p49
      %p51 = scmp.ne.s32.totalorder %s43, %s45
      %p52 = scmp.eq.s32.totalorder %s14, 1
      %p53 = por %p51, %p52
      %p54 = scmp.ne.s32.totalorder %s45, %s46
      %p55 = scmp.eq.s32.totalorder %s14, 0
      %p56 = por %p54, %p55
      %p57 = scmp.ne.s32.totalorder %s45, %s46
      %p58 = scmp.eq.s32.totalorder %s15, 1
      %p59 = por %p57, %p58
      %p61 = scmp.ne.s32.totalorder %s46, %s60
      %p62 = scmp.eq.s32.totalorder %s15, 0
      %p63 = por %p61, %p62
      %s65 = sadd.s32 %s64, 1
      %p68 = scmp.eq.s32.totalorder %s9, 1
      %p69 = scmp.ne.s32.totalorder %s64, %s66
      %p70 = scmp.eq.s32.totalorder %s9, 0
      %p71 = por %p69, %p70
      %p72 = scmp.ne.s32.totalorder %s64, %s66
      %p73 = scmp.eq.s32.totalorder %s14, 1
      %p74 = por %p72, %p73
      %p75 = scmp.ne.s32.totalorder %s66, %s67
      %p76 = scmp.eq.s32.totalorder %s14, 0
      %p77 = por %p75, %p76
      %p78 = scmp.ne.s32.totalorder %s66, %s67
      %p79 = scmp.eq.s32.totalorder %s15, 1
      %p80 = por %p78, %p79
      %p82 = scmp.ne.s32.totalorder %s67, %s81
      %p83 = scmp.eq.s32.totalorder %s15, 0
      %p84 = por %p82, %p83
      %s85 = ssub.s32 %s9, %s16
      %p86 = scmp.eq.s32.totalorder %s85, 0
      %s88 = sadd.s32 %s87, 1
      %s89 = scalar_select %p86, %s87, %s88
      %p92 = pneg %p86
      %p93 = scmp.eq.s32.totalorder %s9, 1
      %p94 = por %p92, %p93
      %p95 = scmp.ne.s32.totalorder %s87, %s90
      %p96 = scmp.eq.s32.totalorder %s9, 0
      %p97 = por %p95, %p96
      %p98 = scmp.ne.s32.totalorder %s87, %s90
      %p99 = scmp.eq.s32.totalorder %s14, 1
      %p100 = por %p98, %p99
      %p101 = scmp.ne.s32.totalorder %s90, %s91
      %p102 = scmp.eq.s32.totalorder %s14, 0
      %p103 = por %p101, %p102
      %p104 = scmp.ne.s32.totalorder %s90, %s91
      %p105 = scmp.eq.s32.totalorder %s15, 1
      %p106 = por %p104, %p105
      %p108 = scmp.ne.s32.totalorder %s91, %s107
      %p109 = scmp.eq.s32.totalorder %s15, 0
      %p110 = por %p108, %p109
      %p111 = scmp.le.s32.totalorder 1, %s9
      %p112 = scmp.lt.s32.totalorder %s9, 3
      %p113 = pnand %p111, %p112
      %p114 = pneg %p113
      // Predicated region
      $region9: #{tpu_custom_call.1} parent=5 // pred_check
        _
      $region10: #{tpu_custom_call.1} parent=5 // pred_check_branch
        %116 = sbr.rel (%p113) target = $region12
      $region11: #{tpu_custom_call.1} parent=5 // pred_region
        %s117 = ssub.s32 %s9, 1
        // Predicated region
        $region13: #{tpu_custom_call.1} parent=11 // pred_check
          %p118 = pneg %p56
        $region14: #{tpu_custom_call.1} parent=11 // pred_check_branch
          %120 = sbr.rel (%p118) target = $region16
        $region15: #{tpu_custom_call.1} parent=11 // pred_region
          _
        $region16: #{tpu_custom_call.1} parent=11 // pred_fallthru
          _
        // Predicated region
        $region17: #{tpu_custom_call.1} parent=11 // pred_check
          %p121 = pneg %p77
        $region18: #{tpu_custom_call.1} parent=11 // pred_check_branch
          %123 = sbr.rel (%p121) target = $region20
        $region19: #{tpu_custom_call.1} parent=11 // pred_region
          _
        $region20: #{tpu_custom_call.1} parent=11 // pred_fallthru
          _
      $region12: #{tpu_custom_call.1} parent=5 // pred_fallthru
        _
      %p124 = scmp.lt.s32.totalorder %s9, 2
      // Predicated region
      $region21: #{tpu_custom_call.1} parent=5 // pred_check
        %p125 = pneg %p124
      $region22: #{tpu_custom_call.1} parent=5 // pred_check_branch
        %127 = sbr.rel (%p125) target = $region24
      $region23: #{tpu_custom_call.1} parent=5 // pred_region
        // Predicated region
        $region25: #{tpu_custom_call.1} parent=23 // pred_check
          %p128 = pneg %p29
        $region26: #{tpu_custom_call.1} parent=23 // pred_check_branch
          %130 = sbr.rel (%p128) target = $region28
        $region27: #{tpu_custom_call.1} parent=23 // pred_region
          %s131 = smul.u32 13, %s9
          %s132 = ssub.s32 25, %s131
          %p133 = scmp.lt.s32.totalorder %s132, 13
          %s134 = scalar_select %p133, %s132, 13
          %s135 = smul.u32 8, %s134
          %p136 = scmp.lt.s32.totalorder %s131, 24
          %s137 = scalar_select %p136, %s131, 24
          %s138 = smul.addr %s137, 8
          %s139 = scalar_lea.vmem %s0, %s138
          %s140 = smul.u32 13, %s9
          %s141 = ssub.s32 25, %s140
          %p142 = scmp.lt.s32.totalorder %s141, 13
          %s143 = scalar_select %p142, %s141, 13
          %s144 = smul.u32 8, %s143
        $region28: #{tpu_custom_call.1} parent=23 // pred_fallthru
          _
      $region24: #{tpu_custom_call.1} parent=5 // pred_fallthru
        _
      %p145 = scmp.le.s32.totalorder 1, %s9
      %p146 = scmp.lt.s32.totalorder %s9, 3
      %p147 = pnand %p145, %p146
      %p148 = pneg %p147
      // Predicated region
      $region29: #{tpu_custom_call.1} parent=5 // pred_check
        _
      $region30: #{tpu_custom_call.1} parent=5 // pred_check_branch
        %150 = sbr.rel (%p147) target = $region32
      $region31: #{tpu_custom_call.1} parent=5 // pred_region
        %s151 = ssub.s32 %s9, 1
        %s152 = smul.u32 13, %s14
        %s153 = ssub.s32 25, %s152
        %p154 = scmp.lt.s32.totalorder %s153, 13
        %s155 = scalar_select %p154, %s153, 13
        %s156 = smul.u32 8, %s155
        %p157 = scmp.lt.s32.totalorder %s152, 24
        %s158 = scalar_select %p157, %s152, 24
        %s159 = smul.addr %s158, 8
        %s160 = scalar_lea.vmem %s0, %s159
        %p161 = pneg %p35
        %p162 = pneg %p32
        %p163 = pneg %p56
        %p164 = pneg %p53
        %p165 = pneg %p77
        %p166 = pneg %p74
        %p167 = pneg %p103
        %p168 = pneg %p100
        %s169 = sand.u32 %s90, 1
        %s170 = sand.u32 %s90, 1
        %s171 = smul.addr %s170, 208
        %s172 = scalar_lea.vmem [#allocation2], %s171
        %s173 = smul.u32 13, %s14
        %s174 = ssub.s32 25, %s173
        %p175 = scmp.lt.s32.totalorder %s174, 13
        %s176 = scalar_select %p175, %s174, 13
        %s177 = smul.u32 8, %s176
        %p178 = scmp.lt.s32.totalorder %s173, 24
        %s179 = scalar_select %p178, %s173, 24
        %s180 = smul.addr %s179, 8
        %s181 = scalar_lea.vmem %s0, %s180
        %s182 = smul.u32 13, %s14
        %s183 = ssub.s32 25, %s182
        %p184 = scmp.lt.s32.totalorder %s183, 13
        %s185 = scalar_select %p184, %s183, 13
        %s186 = smul.u32 8, %s185
        %s187 = smul.u32 13, %s14
        %s188 = ssub.s32 25, %s187
        %p189 = scmp.lt.s32.totalorder %s188, 13
        %s190 = scalar_select %p189, %s188, 13
        %s191 = smul.u32 8, %s190
        %s192 = smul.u32 %s191, 2
        %v193 = vld [vmem:[%s181] sm:$0xff]
        %v194 = vld [vmem:[%s181 + $0x8] sm:$0xff]
        %v195 = vld [vmem:[%s181 + $0x10] sm:$0xff]
        %v196 = vld [vmem:[%s181 + $0x18] sm:$0xff]
        %v197 = vld [vmem:[%s181 + $0x20] sm:$0xff]
        %v198 = vld [vmem:[%s181 + $0x28] sm:$0xff]
        %v199 = vld [vmem:[%s181 + $0x30] sm:$0xff]
        %v200 = vld [vmem:[%s181 + $0x38] sm:$0xff]
        %v201 = vld [vmem:[%s181 + $0x40] sm:$0xff]
        %v202 = vld [vmem:[%s181 + $0x48] sm:$0xff]
        %v203 = vld [vmem:[%s181 + $0x50] sm:$0xff]
        %v204 = vld [vmem:[%s181 + $0x58] sm:$0xff]
        %v205 = vld [vmem:[%s181 + $0x60] sm:$0xff]
        %v206 = vld [vmem:[%s1] sm:$0xff]
        %v207 = vld [vmem:[%s1 + $0x8] sm:$0xff]
        %v208 = vld [vmem:[%s1 + $0x10] sm:$0xff]
        %v209 = vld [vmem:[%s1 + $0x18] sm:$0xff]
        %v210 = vld [vmem:[%s1 + $0x20] sm:$0xff]
        %v211 = vld [vmem:[%s1 + $0x28] sm:$0xff]
        %v212 = vld [vmem:[%s1 + $0x30] sm:$0xff]
        %v213 = vld [vmem:[%s1 + $0x38] sm:$0xff]
        %v214 = vld [vmem:[%s2] sm:$0x3]
        %v216 = vperm.slane %v214, 0
        %v217 = vperm.slane %v214, 1
        %vm220 = vcmask 261120
        %v222 = vsel %vm220, %v193, 0
        %v225 = vsel %vm220, %v194, 0
        %v228 = vsel %vm220, %v195, 0
        %v231 = vsel %vm220, %v196, 0
        %v234 = vsel %vm220, %v197, 0
        %v237 = vsel %vm220, %v198, 0
        %v240 = vsel %vm220, %v199, 0
        %v243 = vsel %vm220, %v200, 0
        %v246 = vsel %vm220, %v201, 0
        %v249 = vsel %vm220, %v202, 0
        %v252 = vsel %vm220, %v203, 0
        %v255 = vsel %vm220, %v204, 0
        %v258 = vsel %vm220, %v205, 0
        %260 = vmatpush.msra.mxu0 0.0
        %261 = vmatpush.msra.mxu0 0.0
        %262 = vmatpush.msra.mxu0 0.0
        %263 = vmatpush.msra.mxu0 0.0
        %264 = vmatpush.msra.mxu0 0.0
        %265 = vmatpush.msra.mxu0 0.0
        %266 = vmatpush.msra.mxu0 0.0
        %267 = vmatpush.msra.mxu0 0.0
        %268 = vmatpush.msra.mxu0 0.0
        %269 = vmatpush.msra.mxu0 0.0
        %270 = vmatpush.msra.mxu0 0.0
        %271 = vmatpush.msra.mxu0 0.0
        %272 = vmatpush.msra.mxu0 %v212
        %273 = vmatpush.msra.mxu0 %v210
        %274 = vmatpush.msra.mxu0 %v208
        %275 = vmatpush.msra.mxu0 %v206
        %276 = vmatmul.f32.gmra.mxu0 %v222
        %v277 = vpop.f32.mrf.mxu0
        %v278 = vadd.f32 %v216, %v277
        %279 = vmatmul.f32.gmra.mxu0 %v225
        %v280 = vpop.f32.mrf.mxu0
        %v281 = vadd.f32 %v216, %v280
        %282 = vmatmul.f32.gmra.mxu0 %v228
        %v283 = vpop.f32.mrf.mxu0
        %v284 = vadd.f32 %v216, %v283
        %285 = vmatmul.f32.gmra.mxu0 %v231
        %v286 = vpop.f32.mrf.mxu0
        %v287 = vadd.f32 %v216, %v286
        %288 = vmatmul.f32.gmra.mxu0 %v234
        %v289 = vpop.f32.mrf.mxu0
        %v290 = vadd.f32 %v216, %v289
        %291 = vmatmul.f32.gmra.mxu0 %v237
        %v292 = vpop.f32.mrf.mxu0
        %v293 = vadd.f32 %v216, %v292
        %294 = vmatmul.f32.gmra.mxu0 %v240
        %v295 = vpop.f32.mrf.mxu0
        %v296 = vadd.f32 %v216, %v295
        %297 = vmatmul.f32.gmra.mxu0 %v243
        %v298 = vpop.f32.mrf.mxu0
        %v299 = vadd.f32 %v216, %v298
        %300 = vmatmul.f32.gmra.mxu0 %v246
        %v301 = vpop.f32.mrf.mxu0
        %v302 = vadd.f32 %v216, %v301
        %303 = vmatmul.f32.gmra.mxu0 %v249
        %v304 = vpop.f32.mrf.mxu0
        %v305 = vadd.f32 %v216, %v304
        %306 = vmatmul.f32.gmra.mxu0 %v252
        %v307 = vpop.f32.mrf.mxu0
        %v308 = vadd.f32 %v216, %v307
        %309 = vmatmul.f32.gmra.mxu0 %v255
        %v310 = vpop.f32.mrf.mxu0
        %v311 = vadd.f32 %v216, %v310
        %312 = vmatmul.f32.gmra.mxu0 %v258
        %v313 = vpop.f32.mrf.mxu0
        %v314 = vadd.f32 %v216, %v313
        %315 = vdwg.mxu0
        %316 = vmatpush.msra.mxu0 0.0
        %317 = vmatpush.msra.mxu0 0.0
        %318 = vmatpush.msra.mxu0 0.0
        %319 = vmatpush.msra.mxu0 0.0
        %320 = vmatpush.msra.mxu0 0.0
        %321 = vmatpush.msra.mxu0 0.0
        %322 = vmatpush.msra.mxu0 0.0
        %323 = vmatpush.msra.mxu0 0.0
        %324 = vmatpush.msra.mxu0 0.0
        %325 = vmatpush.msra.mxu0 0.0
        %326 = vmatpush.msra.mxu0 0.0
        %327 = vmatpush.msra.mxu0 0.0
        %328 = vmatpush.msra.mxu0 %v213
        %329 = vmatpush.msra.mxu0 %v211
        %330 = vmatpush.msra.mxu0 %v209
        %331 = vmatpush.msra.mxu0 %v207
        %332 = vmatmul.f32.gmra.mxu0 %v222
        %v333 = vpop.f32.mrf.mxu0
        %v334 = vadd.f32 %v217, %v333
        %335 = vmatmul.f32.gmra.mxu0 %v225
        %v336 = vpop.f32.mrf.mxu0
        %v337 = vadd.f32 %v217, %v336
        %338 = vmatmul.f32.gmra.mxu0 %v228
        %v339 = vpop.f32.mrf.mxu0
        %v340 = vadd.f32 %v217, %v339
        %341 = vmatmul.f32.gmra.mxu0 %v231
        %v342 = vpop.f32.mrf.mxu0
        %v343 = vadd.f32 %v217, %v342
        %344 = vmatmul.f32.gmra.mxu0 %v234
        %v345 = vpop.f32.mrf.mxu0
        %v346 = vadd.f32 %v217, %v345
        %347 = vmatmul.f32.gmra.mxu0 %v237
        %v348 = vpop.f32.mrf.mxu0
        %v349 = vadd.f32 %v217, %v348
        %350 = vmatmul.f32.gmra.mxu0 %v240
        %v351 = vpop.f32.mrf.mxu0
        %v352 = vadd.f32 %v217, %v351
        %353 = vmatmul.f32.gmra.mxu0 %v243
        %v354 = vpop.f32.mrf.mxu0
        %v355 = vadd.f32 %v217, %v354
        %356 = vmatmul.f32.gmra.mxu0 %v246
        %v357 = vpop.f32.mrf.mxu0
        %v358 = vadd.f32 %v217, %v357
        %359 = vmatmul.f32.gmra.mxu0 %v249
        %v360 = vpop.f32.mrf.mxu0
        %v361 = vadd.f32 %v217, %v360
        %362 = vmatmul.f32.gmra.mxu0 %v252
        %v363 = vpop.f32.mrf.mxu0
        %v364 = vadd.f32 %v217, %v363
        %365 = vmatmul.f32.gmra.mxu0 %v255
        %v366 = vpop.f32.mrf.mxu0
        %v367 = vadd.f32 %v217, %v366
        %368 = vmatmul.f32.gmra.mxu0 %v258
        %v369 = vpop.f32.mrf.mxu0
        %v370 = vadd.f32 %v217, %v369
        %371 = vdwg.mxu0
        %372 = vst [vmem:[%s172] sm:$0xff] %v278
        %vm373 = vcmask 523264
        %374 = vst.msk [vmem:[%s172 + $0x8] sm:$0xff] %vm373, %v334
        %375 = vst [vmem:[%s172 + $0x10] sm:$0xff] %v281
        %376 = vst.msk [vmem:[%s172 + $0x18] sm:$0xff] %vm373, %v337
        %377 = vst [vmem:[%s172 + $0x20] sm:$0xff] %v284
        %378 = vst.msk [vmem:[%s172 + $0x28] sm:$0xff] %vm373, %v340
        %379 = vst [vmem:[%s172 + $0x30] sm:$0xff] %v287
        %380 = vst.msk [vmem:[%s172 + $0x38] sm:$0xff] %vm373, %v343
        %381 = vst [vmem:[%s172 + $0x40] sm:$0xff] %v290
        %382 = vst.msk [vmem:[%s172 + $0x48] sm:$0xff] %vm373, %v346
        %383 = vst [vmem:[%s172 + $0x50] sm:$0xff] %v293
        %384 = vst.msk [vmem:[%s172 + $0x58] sm:$0xff] %vm373, %v349
        %385 = vst [vmem:[%s172 + $0x60] sm:$0xff] %v296
        %386 = vst.msk [vmem:[%s172 + $0x68] sm:$0xff] %vm373, %v352
        %387 = vst [vmem:[%s172 + $0x70] sm:$0xff] %v299
        %388 = vst.msk [vmem:[%s172 + $0x78] sm:$0xff] %vm373, %v355
        %389 = vst [vmem:[%s172 + $0x80] sm:$0xff] %v302
        %390 = vst.msk [vmem:[%s172 + $0x88] sm:$0xff] %vm373, %v358
        %391 = vst [vmem:[%s172 + $0x90] sm:$0xff] %v305
        %392 = vst.msk [vmem:[%s172 + $0x98] sm:$0xff] %vm373, %v361
        %393 = vst [vmem:[%s172 + $0xa0] sm:$0xff] %v308
        %394 = vst.msk [vmem:[%s172 + $0xa8] sm:$0xff] %vm373, %v364
        %395 = vst [vmem:[%s172 + $0xb0] sm:$0xff] %v311
        %396 = vst.msk [vmem:[%s172 + $0xb8] sm:$0xff] %vm373, %v367
        %397 = vst [vmem:[%s172 + $0xc0] sm:$0xff] %v314
        %398 = vst.msk [vmem:[%s172 + $0xc8] sm:$0xff] %vm373, %v370
        %s399 = sand.u32 %s90, 1
        %s400 = sand.u32 %s90, 1
        %s401 = smul.addr %s400, 208
        %s402 = scalar_lea.vmem [#allocation2], %s401
        // Predicated region
        $region33: #{tpu_custom_call.1} parent=31 // pred_check
          %p403 = pneg %p100
        $region34: #{tpu_custom_call.1} parent=31 // pred_check_branch
          %405 = sbr.rel (%p403) target = $region36
        $region35: #{tpu_custom_call.1} parent=31 // pred_region
          %s406 = smul.u32 13, %s14
          %s407 = ssub.s32 25, %s406
          %p408 = scmp.lt.s32.totalorder %s407, 13
          %s409 = scalar_select %p408, %s407, 13
          %s410 = smul.u32 8, %s409
          %s411 = smul.u32 %s410, 2
          %p412 = scmp.ne.s32.totalorder 0, %s411
          %s413 = smul.addr %s406, 2
          %s414 = smul.addr %s413, 8
          %s415 = scalar_lea.vmem %s3, %s414
          // Predicated region
          $region37: #{tpu_custom_call.1} parent=35 // pred_check
            %p416 = pneg %p412
          $region38: #{tpu_custom_call.1} parent=35 // pred_check_branch
            %418 = sbr.rel (%p416) target = $region40
          $region39: #{tpu_custom_call.1} parent=35 // pred_region
            // Predicated region
            $region41: #{tpu_custom_call.1} parent=39 // pred_check
              _
            $region42: #{tpu_custom_call.1} parent=39 // pred_check_branch
              %420 = sbr.rel (0) target = $region44
            $region43: #{tpu_custom_call.1} parent=39 // pred_region
              %s421 = sdiv.u32.pop %s409, 13
              %s422 = srem.u32.pop %s409, 13
              // While loop
              $region45: #{tpu_custom_call.1} parent=43 // loop_pre_header
                _
              $region46: #{tpu_custom_call.1} parent=43 // loop_header
                %s424 = sphi 0, %s426
                %p425 = scmp.ge.s32.totalorder %s424, %s421
                %s429 = sphi 0, %s486
                %s430 = sphi %s402, %s489
                %s431 = sphi %s415, %s490
              $region47: #{tpu_custom_call.1} parent=43 // loop_header_branch
                %428 = sbr.rel (%p425) target = $region51
              $region48: #{tpu_custom_call.1} parent=43 // loop_body
                %v432 = vld [vmem:[%s430] sm:$0xff]
                %433 = vst [vmem:[%s431] sm:$0xff] %v432
                %v434 = vld [vmem:[%s430 + $0x10] sm:$0xff]
                %435 = vst [vmem:[%s431 + $0x10] sm:$0xff] %v434
                %v436 = vld [vmem:[%s430 + $0x20] sm:$0xff]
                %437 = vst [vmem:[%s431 + $0x20] sm:$0xff] %v436
                %v438 = vld [vmem:[%s430 + $0x30] sm:$0xff]
                %439 = vst [vmem:[%s431 + $0x30] sm:$0xff] %v438
                %v440 = vld [vmem:[%s430 + $0x40] sm:$0xff]
                %441 = vst [vmem:[%s431 + $0x40] sm:$0xff] %v440
                %v442 = vld [vmem:[%s430 + $0x50] sm:$0xff]
                %443 = vst [vmem:[%s431 + $0x50] sm:$0xff] %v442
                %v444 = vld [vmem:[%s430 + $0x60] sm:$0xff]
                %445 = vst [vmem:[%s431 + $0x60] sm:$0xff] %v444
                %v446 = vld [vmem:[%s430 + $0x70] sm:$0xff]
                %447 = vst [vmem:[%s431 + $0x70] sm:$0xff] %v446
                %v448 = vld [vmem:[%s430 + $0x80] sm:$0xff]
                %449 = vst [vmem:[%s431 + $0x80] sm:$0xff] %v448
                %v450 = vld [vmem:[%s430 + $0x90] sm:$0xff]
                %451 = vst [vmem:[%s431 + $0x90] sm:$0xff] %v450
                %v452 = vld [vmem:[%s430 + $0xa0] sm:$0xff]
                %453 = vst [vmem:[%s431 + $0xa0] sm:$0xff] %v452
                %v454 = vld [vmem:[%s430 + $0xb0] sm:$0xff]
                %455 = vst [vmem:[%s431 + $0xb0] sm:$0xff] %v454
                %v456 = vld [vmem:[%s430 + $0xc0] sm:$0xff]
                %457 = vst [vmem:[%s431 + $0xc0] sm:$0xff] %v456
                %v458 = vld [vmem:[%s430 + $0x8] sm:$0xff]
                %459 = vst [vmem:[%s431 + $0x8] sm:$0xff] %v458
                %v460 = vld [vmem:[%s430 + $0x18] sm:$0xff]
                %461 = vst [vmem:[%s431 + $0x18] sm:$0xff] %v460
                %v462 = vld [vmem:[%s430 + $0x28] sm:$0xff]
                %463 = vst [vmem:[%s431 + $0x28] sm:$0xff] %v462
                %v464 = vld [vmem:[%s430 + $0x38] sm:$0xff]
                %465 = vst [vmem:[%s431 + $0x38] sm:$0xff] %v464
                %v466 = vld [vmem:[%s430 + $0x48] sm:$0xff]
                %467 = vst [vmem:[%s431 + $0x48] sm:$0xff] %v466
                %v468 = vld [vmem:[%s430 + $0x58] sm:$0xff]
                %469 = vst [vmem:[%s431 + $0x58] sm:$0xff] %v468
                %v470 = vld [vmem:[%s430 + $0x68] sm:$0xff]
                %471 = vst [vmem:[%s431 + $0x68] sm:$0xff] %v470
                %v472 = vld [vmem:[%s430 + $0x78] sm:$0xff]
                %473 = vst [vmem:[%s431 + $0x78] sm:$0xff] %v472
                %v474 = vld [vmem:[%s430 + $0x88] sm:$0xff]
                %475 = vst [vmem:[%s431 + $0x88] sm:$0xff] %v474
                %v476 = vld [vmem:[%s430 + $0x98] sm:$0xff]
                %477 = vst [vmem:[%s431 + $0x98] sm:$0xff] %v476
                %v478 = vld [vmem:[%s430 + $0xa8] sm:$0xff]
                %479 = vst [vmem:[%s431 + $0xa8] sm:$0xff] %v478
                %v480 = vld [vmem:[%s430 + $0xb8] sm:$0xff]
                %481 = vst [vmem:[%s431 + $0xb8] sm:$0xff] %v480
                %v482 = vld [vmem:[%s430 + $0xc8] sm:$0xff]
                %483 = vst [vmem:[%s431 + $0xc8] sm:$0xff] %v482
                %s484 = sadd.s32 1, %s429
                %p485 = scmp.ge.s32.totalorder %s484, %s421
                %s486 = scalar_select %p485, 0, %s484
                %s487 = smul.u32 %s486, 208
                %s488 = smul.u32 %s486, 208
                %s489 = scalar_lea.vmem %s402, %s487 [#allocation2]
                %s490 = scalar_lea.vmem %s415, %s488
              $region49: #{tpu_custom_call.1} parent=43 // loop_footer
                %s426 = sadd.s32 %s424, 1
              $region50: #{tpu_custom_call.1} parent=43 // loop_footer_branch
                %423 = sbr.rel target = $region46
              $region51: #{tpu_custom_call.1} parent=43 // loop_exit
                _
              %s491 = sdiv.u32.pop %s409, 13
              %s492 = srem.u32.pop %s409, 13
              %s493 = smul.u32 %s491, 13
              %s494 = smul.u32 16, %s493
              %s495 = scalar_lea.vmem %s402, %s494 [#allocation2]
              %s496 = smul.u32 16, %s493
              %s497 = scalar_lea.vmem %s415, %s496
              // While loop
              $region52: #{tpu_custom_call.1} parent=43 // loop_pre_header
                _
              $region53: #{tpu_custom_call.1} parent=43 // loop_header
                %s499 = sphi 0, %s501
                %p500 = scmp.ge.s32.totalorder %s499, %s492
                %s504 = sphi 0, %s513
                %s505 = sphi %s495, %s516
                %s506 = sphi %s497, %s517
              $region54: #{tpu_custom_call.1} parent=43 // loop_header_branch
                %503 = sbr.rel (%p500) target = $region58
              $region55: #{tpu_custom_call.1} parent=43 // loop_body
                %v507 = vld [vmem:[%s505] sm:$0xff]
                %508 = vst [vmem:[%s506] sm:$0xff] %v507
                %v509 = vld [vmem:[%s505 + $0x8] sm:$0xff]
                %510 = vst [vmem:[%s506 + $0x8] sm:$0xff] %v509
                %s511 = sadd.s32 1, %s504
                %p512 = scmp.ge.s32.totalorder %s511, %s492
                %s513 = scalar_select %p512, 0, %s511
                %s514 = smul.u32 %s513, 16
                %s515 = smul.u32 %s513, 16
                %s516 = scalar_lea.vmem %s495, %s514 [#allocation2]
                %s517 = scalar_lea.vmem %s497, %s515
              $region56: #{tpu_custom_call.1} parent=43 // loop_footer
                %s501 = sadd.s32 %s499, 1
              $region57: #{tpu_custom_call.1} parent=43 // loop_footer_branch
                %498 = sbr.rel target = $region53
              $region58: #{tpu_custom_call.1} parent=43 // loop_exit
                _
            $region44: #{tpu_custom_call.1} parent=39 // pred_fallthru
              _
            // Predicated region
            $region59: #{tpu_custom_call.1} parent=39 // pred_check
              _
            $region60: #{tpu_custom_call.1} parent=39 // pred_check_branch
              %519 = sbr.rel target = $region62
            $region61: #{tpu_custom_call.1} parent=39 // pred_region
              _
            $region62: #{tpu_custom_call.1} parent=39 // pred_fallthru
              _
          $region40: #{tpu_custom_call.1} parent=35 // pred_fallthru
            _
          %520 = vnop
        $region36: #{tpu_custom_call.1} parent=31 // pred_fallthru
          _
      $region32: #{tpu_custom_call.1} parent=5 // pred_fallthru
        _
      %p521 = scmp.le.s32.totalorder 2, %s9
      // Predicated region
      $region63: #{tpu_custom_call.1} parent=5 // pred_check
        %p522 = pneg %p521
      $region64: #{tpu_custom_call.1} parent=5 // pred_check_branch
        %524 = sbr.rel (%p522) target = $region66
      $region65: #{tpu_custom_call.1} parent=5 // pred_region
        %s525 = ssub.s32 %s9, 2
        // Predicated region
        $region67: #{tpu_custom_call.1} parent=65 // pred_check
          %p526 = pneg %p106
        $region68: #{tpu_custom_call.1} parent=65 // pred_check_branch
          %528 = sbr.rel (%p526) target = $region70
        $region69: #{tpu_custom_call.1} parent=65 // pred_region
          %s529 = sand.u32 %s91, 1
          %s530 = sand.u32 %s91, 1
          %s531 = smul.addr %s530, 208
          %s532 = scalar_lea.vmem [#allocation2], %s531
        $region70: #{tpu_custom_call.1} parent=65 // pred_fallthru
          _
      $region66: #{tpu_custom_call.1} parent=5 // pred_fallthru
        _
    $region6: #{tpu_custom_call.1} parent=1 // loop_footer
      %s13 = sadd.s32 1, %s9
    $region7: #{tpu_custom_call.1} parent=1 // loop_footer_branch
      %8 = sbr.rel target = $region3
    $region8: #{tpu_custom_call.1} parent=1 // loop_exit
      _

</llo_original>
